<compile_context>
chip_gen: v5e
topology: v5e:2x2
jax: 0.10.0
libtpu: 0.0.40
codegen_flags: <defaults>
</compile_context>

<pallas_src>
import functools
import math

import jax
import jax.numpy as jnp
from jax import lax
from jax.experimental import pallas as pl
from jax.experimental.pallas import tpu as pltpu


def _label_smoothing_kernel(logits_ref, target_ref, loss_ref, *,
                            confidence, smoothing_value, n_rows):
    """Accumulates sum_i sum_c p[i,c] * log_softmax(x)[i,c] over this row tile."""
    @pl.when(pl.program_id(0) == 0)
    def _init():
        loss_ref[...] = jnp.zeros_like(loss_ref)

    x = logits_ref[...].astype(jnp.float32)              # (bn, C)
    bn, c = x.shape

    # Row-wise pieces of log_softmax: log_q[i, c] = x[i, c] - m_i - lse_i.
    m = jnp.max(x, axis=1, keepdims=True)                # (bn, 1)
    lse = jnp.log(jnp.sum(jnp.exp(x - m), axis=1, keepdims=True))
    rowsum = jnp.sum(x, axis=1, keepdims=True)           # (bn, 1)

    # Gather x at the target column without materializing p or log_q.
    tgt = target_ref[...]                                # (bn, 1) int32
    col = lax.broadcasted_iota(jnp.int32, (bn, c), 1)
    x_t = jnp.sum(jnp.where(col == tgt, x, 0.0), axis=1, keepdims=True)

    # sum_c p*log_q = sv * sum_c log_q + (conf - sv) * log_q[i, target_i]
    sv = jnp.float32(smoothing_value)
    dconf = jnp.float32(confidence - smoothing_value)
    mlse = m + lse
    cross = sv * (rowsum - jnp.float32(c) * mlse) + dconf * (x_t - mlse)   # (bn, 1)

    # Mask rows past the true batch size (only emitted when the row tile does not
    # divide N; those rows hold unspecified data from the boundary block).
    if n_rows % bn != 0:
        row0 = pl.program_id(0) * bn
        ridx = row0 + lax.broadcasted_iota(jnp.int32, (bn, 1), 0)
        cross = jnp.where(ridx < n_rows, cross, 0.0)

    loss_ref[...] += jnp.sum(cross, axis=0, keepdims=True)


def label_smoothing_loss(output, target, smoothing, n_classes, *,
                         max_block_rows=1024, block_bytes=8 * 1024 * 1024):
    """output: (N, C) float logits; target: (N,) int class ids. Returns scalar f32 loss."""
    assert output.ndim == 2 and output.shape[1] == n_classes
    assert n_classes > 1, "label smoothing needs n_classes > 1"
    n, c = output.shape

    confidence = 1.0 - smoothing
    smoothing_value = smoothing / (n_classes - 1)

    # Constant-folded sum(p * log p): p takes only two values, so the whole term is
    # N * K with K computed here at trace time (0 * log 0 := 0, matching torch.kl_div).
    k = 0.0
    if confidence > 0.0:
        k += confidence * math.log(confidence)
    if smoothing_value > 0.0:
        k += (n_classes - 1) * smoothing_value * math.log(smoothing_value)

    target2d = target.astype(jnp.int32).reshape(n, 1)

    # Row tile: multiple of 8, capped so one f32 logits tile stays <= ~8 MiB so it
    # double-buffers comfortably on every TPU generation (incl. v7x's 64 MiB VMEM).
    # TODO(synk): also tile C (two-pass / online logsumexp) for vocab-sized class counts.
    bytes_per_row = c * 4
    cap = max(8, min(max_block_rows, (block_bytes // max(bytes_per_row, 1)) // 8 * 8))
    block_n = min(cap, ((n + 7) // 8) * 8)
    num_tiles = pl.cdiv(n, block_n)

    kernel = functools.partial(_label_smoothing_kernel,
                               confidence=confidence,
                               smoothing_value=smoothing_value,
                               n_rows=n)

    cross_sum = pl.pallas_call(
        kernel,
        out_shape=jax.ShapeDtypeStruct((1, 1), jnp.float32),
        grid=(num_tiles,),
        in_specs=[
            pl.BlockSpec((block_n, c), lambda i: (i, 0)),   # logits, native dtype
            pl.BlockSpec((block_n, 1), lambda i: (i, 0)),   # target ids
        ],
        out_specs=pl.BlockSpec((1, 1), lambda i: (0, 0)),    # resident accumulator
        compiler_params=pltpu.CompilerParams(
            dimension_semantics=("arbitrary",)),
    )(output, target2d)

    # loss = sum p*log p - sum p*log q = N*K - accumulated cross term.
    return jnp.float32(n * k) - cross_sum[0, 0]


def _reference(output, target, smoothing, n_classes):
    """Pure-JAX reference mirroring the PyTorch forward, for sanity checking."""
    confidence = 1.0 - smoothing
    smoothing_value = smoothing / (n_classes - 1)
    n = output.shape[0]
    p = jnp.full((n, n_classes), smoothing_value, jnp.float32)
    p = p.at[jnp.arange(n), target].set(confidence)
    log_q = jax.nn.log_softmax(output.astype(jnp.float32), axis=1)
    p_log_p = jnp.where(p > 0, p * jnp.log(jnp.maximum(p, 1e-30)), 0.0)
    return jnp.sum(p_log_p - p * log_q)


if __name__ == "__main__":
    key = jax.random.PRNGKey(0)
    k1, k2 = jax.random.split(key)

    n_classes = 32      # synthetic config (module reads a global n_classes)
    batch = 8
    smoothing = 0.1

    logits = jax.random.normal(k1, (batch, n_classes), dtype=jnp.float32)
    target = jax.random.randint(k2, (batch,), 0, n_classes, dtype=jnp.int32)

    loss = label_smoothing_loss(logits, target, smoothing, n_classes)
    jax.block_until_ready(loss)

    ref = _reference(logits, target, smoothing, n_classes)
    assert jnp.allclose(loss, ref, rtol=1e-4, atol=1e-4), (loss, ref)

    print("KERNEL_OK")
</pallas_src>

<mosaic_0001>
module attributes {stable_mosaic.version = 11 : i64} {
  func.func @_label_smoothing_kernel(%arg0: i32, %arg1: memref<8x32xf32, #tpu.memory_space<vmem>>, %arg2: memref<8x1xi32, #tpu.memory_space<vmem>>, %arg3: memref<1x1xf32, #tpu.memory_space<vmem>>) attributes {dimension_semantics = [#tpu.dimension_semantics<arbitrary>], iteration_bounds = array<i64: 1>, scalar_prefetch = 0 : i64, scratch_operands = 0 : i64, tpu.core_type = #tpu.core_type<tc>, window_params = [{transform_indices = @transform_0, window_bounds = array<i64: 8, 32>}, {transform_indices = @transform_1, window_bounds = array<i64: 8, 1>}, {pipeline_mode = #tpu.pipeline_mode<synchronous>, transform_indices = @transform_2, window_bounds = array<i64: 1, 1>}]} {
    %c0_i32 = arith.constant 0 : i32
    %0 = arith.cmpi eq, %arg0, %c0_i32 : i32
    %1 = arith.extui %0 : i1 to i32
    %c0_i32_0 = arith.constant 0 : i32
    %2 = arith.cmpi ne, %1, %c0_i32_0 : i32
    scf.if %2 {
      %cst_16 = arith.constant 0.000000e+00 : f32
      %37 = vector.broadcast %cst_16 : f32 to vector<1x1xf32>
      %c0_17 = arith.constant 0 : index
      %c0_18 = arith.constant 0 : index
      %38 = vector.load %arg3[%c0_17, %c0_18] : memref<1x1xf32, #tpu.memory_space<vmem>>, vector<1x1xf32>
      tpu.vector_store %arg3[%c0_17, %c0_18], %37 {strides = array<i32>} : memref<1x1xf32, #tpu.memory_space<vmem>>, vector<1x1xf32>,
    } else {
    }
    %c0 = arith.constant 0 : index
    %c0_1 = arith.constant 0 : index
    %3 = vector.load %arg1[%c0, %c0_1] : memref<8x32xf32, #tpu.memory_space<vmem>>, vector<8x32xf32>
    %cst = arith.constant dense<0xFF800000> : vector<8xf32>
    %4 = vector.multi_reduction <maximumf>, %3, %cst [1] : vector<8x32xf32> to vector<8xf32>
    %5 = vector.shape_cast %4 : vector<8xf32> to vector<8x1xf32>
    %6 = vector.broadcast %5 : vector<8x1xf32> to vector<8x32xf32>
    %7 = arith.subf %3, %6 : vector<8x32xf32>
    %8 = math.exp %7 : vector<8x32xf32>
    %cst_2 = arith.constant dense<0.000000e+00> : vector<8xf32>
    %9 = vector.multi_reduction <add>, %8, %cst_2 [1] : vector<8x32xf32> to vector<8xf32>
    %10 = vector.shape_cast %9 : vector<8xf32> to vector<8x1xf32>
    %11 = math.log %10 : vector<8x1xf32>
    %cst_3 = arith.constant dense<0.000000e+00> : vector<8xf32>
    %12 = vector.multi_reduction <add>, %3, %cst_3 [1] : vector<8x32xf32> to vector<8xf32>
    %13 = vector.shape_cast %12 : vector<8xf32> to vector<8x1xf32>
    %c0_4 = arith.constant 0 : index
    %c0_5 = arith.constant 0 : index
    %14 = vector.load %arg2[%c0_4, %c0_5] : memref<8x1xi32, #tpu.memory_space<vmem>>, vector<8x1xi32>
    %15 = tpu.iota {dimensions = array<i32: 1>} : vector<8x32xi32>
    %16 = vector.broadcast %14 : vector<8x1xi32> to vector<8x32xi32>
    %17 = arith.cmpi eq, %15, %16 : vector<8x32xi32>
    %cst_6 = arith.constant 0.000000e+00 : f32
    %18 = vector.broadcast %cst_6 : f32 to vector<8x32xf32>
    %19 = arith.select %17, %3, %18 : vector<8x32xi1>, vector<8x32xf32>
    %cst_7 = arith.constant dense<0.000000e+00> : vector<8xf32>
    %20 = vector.multi_reduction <add>, %19, %cst_7 [1] : vector<8x32xf32> to vector<8xf32>
    %21 = vector.shape_cast %20 : vector<8xf32> to vector<8x1xf32>
    %22 = arith.addf %5, %11 : vector<8x1xf32>
    %cst_8 = arith.constant 3.200000e+01 : f32
    %23 = vector.broadcast %cst_8 : f32 to vector<8x1xf32>
    %24 = arith.mulf %23, %22 : vector<8x1xf32>
    %25 = arith.subf %13, %24 : vector<8x1xf32>
    %cst_9 = arith.constant 0.0032258064 : f32
    %26 = vector.broadcast %cst_9 : f32 to vector<8x1xf32>
    %27 = arith.mulf %26, %25 : vector<8x1xf32>
    %28 = arith.subf %21, %22 : vector<8x1xf32>
    %cst_10 = arith.constant 0.896774172 : f32
    %29 = vector.broadcast %cst_10 : f32 to vector<8x1xf32>
    %30 = arith.mulf %29, %28 : vector<8x1xf32>
    %31 = arith.addf %27, %30 : vector<8x1xf32>
    %c0_11 = arith.constant 0 : index
    %c0_12 = arith.constant 0 : index
    %32 = vector.load %arg3[%c0_11, %c0_12] : memref<1x1xf32, #tpu.memory_space<vmem>>, vector<1x1xf32>
    %cst_13 = arith.constant dense<0.000000e+00> : vector<1xf32>
    %33 = vector.multi_reduction <add>, %31, %cst_13 [0] : vector<8x1xf32> to vector<1xf32>
    %34 = vector.shape_cast %33 : vector<1xf32> to vector<1x1xf32>
    %35 = arith.addf %32, %34 : vector<1x1xf32>
    %c0_14 = arith.constant 0 : index
    %c0_15 = arith.constant 0 : index
    %36 = vector.load %arg3[%c0_14, %c0_15] : memref<1x1xf32, #tpu.memory_space<vmem>>, vector<1x1xf32>
    tpu.vector_store %arg3[%c0_14, %c0_15], %35 {strides = array<i32>} : memref<1x1xf32, #tpu.memory_space<vmem>>, vector<1x1xf32>,
    return
  }
  func.func @transform_0(%arg0: i32) -> (i32, i32) {
    %c0_i32 = arith.constant 0 : i32
    %c0_i32_0 = arith.constant 0 : i32
    return %arg0, %c0_i32 : i32, i32
  }
  func.func @transform_1(%arg0: i32) -> (i32, i32) {
    %c0_i32 = arith.constant 0 : i32
    %c0_i32_0 = arith.constant 0 : i32
    return %arg0, %c0_i32 : i32, i32
  }
  func.func @transform_2(%arg0: i32) -> (i32, i32) {
    %c0_i32 = arith.constant 0 : i32
    %c0_i32_0 = arith.constant 0 : i32
    %c0_i32_1 = arith.constant 0 : i32
    return %c0_i32, %c0_i32_0 : i32, i32
  }
}

</mosaic_0001>

<llo_original>
// kernel: tpu_custom_call.1
$region0: #{tpu_custom_call.1}
  #allocation0 [shape = 'u32[]', space=smem, size = 0x4, offset = 0x4, fixed_abs, tag = 'smem constant byte address 0x4 - core index']
  #allocation1 [shape = 'u32[72,128]{1,0:T(1,128)}', space=vmem, size = 0x9000, scoped, tag = 'internal scratch']
  %s0 = inlined_call_operand.vmem [shape: f32[8,32], index: 0, kind: input, shape index: {}]
  %s1 = inlined_call_operand.vmem [shape: s32[8,1], index: 1, kind: input, shape index: {}]
  %s2 = inlined_call_operand.hbm [shape: f32[1,1], index: 2, kind: output, shape index: {}]
  %s3 = sld [smem:[#allocation0]]
  $region22: #{tpu_custom_call.1} parent=0
    _
  %s5 = ssub.s32 1, %s3
  %s6 = scalar_select 0, %s5, %s3
  $region1: #{tpu_custom_call.1} parent=0
    #allocation2 [shape = 'u8[512]{0}', space=vmem, size = 0x400, scoped, tag = 'output window, operand 0, single buffered']
    #allocation3 [shape = 's32[1]{0}', space=sflag, size = 0x4, scoped, tag = 'scoped memory for tpu_custom_call.1']
    %7 = vsyncpa [#allocation3], 0
    // Predicated region
    $region2: #{tpu_custom_call.1} parent=1 // pred_check
      _
    $region3: #{tpu_custom_call.1} parent=1 // pred_check_branch
      %9 = sbr.rel (0) target = $region5
    $region4: #{tpu_custom_call.1} parent=1 // pred_region
      _
    $region5: #{tpu_custom_call.1} parent=1 // pred_fallthru
      _
    // Predicated region
    $region6: #{tpu_custom_call.1} parent=1 // pred_check
      _
    $region7: #{tpu_custom_call.1} parent=1 // pred_check_branch
      %11 = sbr.rel (0) target = $region9
    $region8: #{tpu_custom_call.1} parent=1 // pred_region
      _
    $region9: #{tpu_custom_call.1} parent=1 // pred_fallthru
      _
    %p12 = scmp.eq.s32.totalorder 0, 0
    // Predicated region
    $region10: #{tpu_custom_call.1} parent=1 // pred_check
      %p13 = pneg %p12
    $region11: #{tpu_custom_call.1} parent=1 // pred_check_branch
      %15 = sbr.rel (%p13) target = $region13
    $region12: #{tpu_custom_call.1} parent=1 // pred_region
      %vm16 = vcmask 0
      %17 = vst.msk [vmem:[#allocation2] sm:$0x1] %vm16, 0.0
    $region13: #{tpu_custom_call.1} parent=1 // pred_fallthru
      _
    %v18 = vld [vmem:[%s0] sm:$0xff]
    %vm19 = vcmask 261120
    %v20 = vsel %vm19, %v18, -inf
    %21 = vmax.xlane.f32.xlu0 %v20
    %v22 = vpop.xlane.xlu0 %21
    %v23 = vsub.f32 %v18, %v22
    %v24 = vmul.f32 %v23, 1.442695
    %v25 = vpow.pop %v24
    %v26 = vsel %vm19, %v25, 0.0
    %27 = vadd.xlane.f32.xlu0 %v26
    %v28 = vpop.xlane.xlu0 %27
    %v29 = vlog2.pop %v28
    %v30 = vmul.f32 %v29, 0.6931472
    %v31 = vsel %vm19, %v18, 0.0
    %32 = vadd.xlane.f32.xlu0 %v31
    %v33 = vpop.xlane.xlu0 %32
    %v34 = vld [vmem:[%s1] sm:$0xff]
    %v35 = vlaneseq
    %v36 = vand.u32 %v35, 127
    %37 = vset.pattern.permute.xlu0 0
    %38 = vperm.xlu0 %37, %v34
    %v39 = vpop.permute.xlu0 %38
    %vm40 = vcmp.eq.s32.totalorder %v36, %v39
    %v41 = vsel %vm40, %v18, 0.0
    %v42 = vsel %vm19, %v41, 0.0
    %43 = vadd.xlane.f32.xlu0 %v42
    %v44 = vpop.xlane.xlu0 %43
    %v45 = vadd.f32 %v22, %v30
    %v46 = vmul.f32 %v45, 32.0
    %v47 = vsub.f32 %v33, %v46
    %v48 = vmul.f32 %v47, 0.0032258064
    %v49 = vsub.f32 %v44, %v45
    %v50 = vmul.f32 %v49, 0.8967742
    %v51 = vadd.f32 %v48, %v50
    %v52 = vld [vmem:[#allocation2] sm:$0x1]
    %v53 = vrot.slane %v51, 4
    %v54 = vadd.f32 %v51, %v53
    %v55 = vrot.slane %v54, 2
    %v56 = vadd.f32 %v54, %v55
    %v57 = vrot.slane %v56, 1
    %v58 = vadd.f32 %v56, %v57
    %v59 = vadd.f32 %v52, %v58
    %vm60 = vcmask 0
    %61 = vst.msk [vmem:[#allocation2] sm:$0x1] %vm60, %v59
    // Predicated region
    $region14: #{tpu_custom_call.1} parent=1 // pred_check
      _
    $region15: #{tpu_custom_call.1} parent=1 // pred_check_branch
      %63 = sbr.rel (0) target = $region17
    $region16: #{tpu_custom_call.1} parent=1 // pred_region
      %65 = vsyncadd [#allocation3], 0
      %s67 = sshll.u32 [#allocation2], 4
      %s68 = int_to_ptr.vmem [resolvable:$true] %s67
      %s69 = sshll.u32 %s2, 4
      %s70 = int_to_ptr.hbm [resolvable:$true] %s69
      %72 = dma.vmem_to_hbm [thread:$0]  %s68, 16, %s70, [#allocation3]
    $region17: #{tpu_custom_call.1} parent=1 // pred_fallthru
      _
    // Predicated region
    $region18: #{tpu_custom_call.1} parent=1 // pred_check
      _
    $region19: #{tpu_custom_call.1} parent=1 // pred_check_branch
      %74 = sbr.rel (0) target = $region21
    $region20: #{tpu_custom_call.1} parent=1 // pred_region
      %76 = dma.done [#allocation3], 16
    $region21: #{tpu_custom_call.1} parent=1 // pred_fallthru
      _
    %77 = vsyncpa [#allocation3], 1

</llo_original>
